<compile_context>
chip_gen: v7x
topology: tpu7x:2x2x1
jax: 0.10.0
libtpu: 0.0.40
codegen_flags: <defaults>
</compile_context>

<pallas_src>
import functools
import math

import jax
import jax.numpy as jnp
from jax import lax
from jax.experimental import pallas as pl
from jax.experimental.pallas import tpu as pltpu

_LANE = 128


# ----------------------------- helpers ---------------------------------------


def _pad_dim(n, multiple=_LANE):
    return n + (-n % multiple)


def _pad_last(x, multiple=_LANE):
    """Zero-pad the last (lane) axis of x up to a multiple of `multiple`."""
    d = x.shape[-1]
    pad = -d % multiple
    if pad == 0:
        return x
    widths = [(0, 0)] * (x.ndim - 1) + [(0, pad)]
    return jnp.pad(x, widths)


@functools.lru_cache(maxsize=1)
def _vmem_budget_bytes():
    """~3/4 of physical VMEM (48 MiB on v7x, 96 MiB on v5e/v6e)."""
    try:
        cap = int(pltpu.get_tpu_info().vmem_capacity_bytes)
    except Exception:
        cap = 64 * 1024 * 1024  # conservative (v7x) fallback
    return (3 * cap) // 4


def _pick_tq(lq, lk, d_in, d_out, itemsize, extra_bytes):
    """Largest q-tile keeping per-step VMEM residency inside the budget."""
    budget = _vmem_budget_bytes()
    # v7x (64 MiB VMEM) -> cap 256; v5e/v6e (128 MiB) -> cap 512.
    cap = 512 if budget > 80 * 1024 * 1024 else 256

    def fits(t):
        # double-buffered q/out tiles and K/V blocks + f32 score/prob slabs.
        tiles = 2 * itemsize * (t * d_in + t * d_out + lk * d_in + lk * d_out)
        slabs = 2 * 4 * t * lk
        return tiles + slabs + extra_bytes <= budget

    if lq <= cap and fits(lq):
        return lq  # whole Lq in one step per batch element
    for t in (512, 256, 128):
        if t <= cap and lq % t == 0 and fits(t):
            return t
    # TODO(synk): flash (online-softmax) Lk tiling for shapes that do not fit.
    return lq


# ----------------------------- kernels ----------------------------------------


def _attention_core(qp, kp, vp, o_ref):
    """qp: (tq, D) pre-scaled; kp: (Lk, D); vp: (Lk, Dv) -> writes o_ref[0]."""
    # s = qp @ kp^T without an explicit transpose (contract both feature dims).
    s = lax.dot_general(qp, kp, (((1,), (1,)), ((), ())),
                        preferred_element_type=jnp.float32)       # (tq, Lk) f32
    m = jnp.max(s, axis=-1, keepdims=True)
    p = jnp.exp(s - m)
    # Exact reciprocal: it only acts on the (tq, 1) row sums, so accuracy is free.
    p = p * pl.reciprocal(jnp.sum(p, axis=-1, keepdims=True), approx=False)
    out = jnp.dot(p.astype(vp.dtype), vp, preferred_element_type=jnp.float32)
    o_ref[0] = out.astype(o_ref.dtype)


def _attention_kernel(q_ref, k_ref, v_ref, o_ref, *, scale):
    # q_ref: (1, tq, D)  k_ref: (1, Lk, D)  v_ref: (1, Lk, Dv)  o_ref: (1, tq, Dv)
    # Fold 1/sqrt(D) into the small q tile in the INPUT dtype (no f32 round
    # trip): Lq*D VPU ops instead of Lq*Lk on the score matrix.
    _attention_core(q_ref[0] * scale, k_ref[0], v_ref[0], o_ref)


def _fused_proj_attention_kernel(q_ref, k_ref, v_ref,
                                 wq_ref, bq_ref, wk_ref, bk_ref, wv_ref, bv_ref,
                                 o_ref, kp_ref, vp_ref):
    # q_ref: (1, tq, Dq_p)  k_ref/v_ref: (1, Lk, Din_p)
    # w*_ref: (in_p, E_p) pre-transposed/padded, b*_ref: (1, E_p)
    # o_ref: (1, tq, E_p)  kp_ref/vp_ref: (Lk, E_p) persistent VMEM scratch.
    in_dt = q_ref.dtype

    # K/V projections hoisted out of the q-tile loop: computed once per batch
    # element (first q tile), cached in VMEM scratch that persists across grid
    # steps, and reused by every q tile.
    @pl.when(pl.program_id(1) == 0)
    def _():
        kp = jnp.dot(k_ref[0], wk_ref[...],
                     preferred_element_type=jnp.float32) + bk_ref[...]
        vp = jnp.dot(v_ref[0], wv_ref[...],
                     preferred_element_type=jnp.float32) + bv_ref[...]
        kp_ref[...] = kp.astype(in_dt)
        vp_ref[...] = vp.astype(in_dt)

    # Q projection; the 1/sqrt(Dq) scale is already folded into wq/bq at init.
    qp = jnp.dot(q_ref[0], wq_ref[...],
                 preferred_element_type=jnp.float32) + bq_ref[...]

    # dropout(p=0.1) on the scores -> identity (eval mode).
    _attention_core(qp.astype(in_dt), kp_ref[...], vp_ref[...], o_ref)


# ----------------------------- wrappers ---------------------------------------


def pallas_attention(q, k, v, scale):
    """q: (B, Lq, D), k: (B, Lk, D), v: (B, Lk, Dv) -> (B, Lq, Dv)."""
    B, Lq, _ = q.shape
    _, Lk, _ = k.shape
    Dv = v.shape[-1]

    # Lane-dense layout: zero-pad feature axes to multiples of 128 (exact for
    # the matmuls; padded output columns are zero and sliced off below).
    q_p, k_p, v_p = _pad_last(q), _pad_last(k), _pad_last(v)
    Dp, Dvp = q_p.shape[-1], v_p.shape[-1]

    tq = _pick_tq(Lq, Lk, Dp, Dvp, q.dtype.itemsize, extra_bytes=0)
    kernel = functools.partial(_attention_kernel, scale=scale)

    out = pl.pallas_call(
        kernel,
        out_shape=jax.ShapeDtypeStruct((B, Lq, Dvp), q.dtype),
        grid_spec=pltpu.PrefetchScalarGridSpec(
            num_scalar_prefetch=0,
            grid=(B, Lq // tq),
            in_specs=[
                pl.BlockSpec((1, tq, Dp), lambda b, qi: (b, qi, 0)),
                pl.BlockSpec((1, Lk, Dp), lambda b, qi: (b, 0, 0)),
                pl.BlockSpec((1, Lk, Dvp), lambda b, qi: (b, 0, 0)),
            ],
            out_specs=pl.BlockSpec((1, tq, Dvp), lambda b, qi: (b, qi, 0)),
        ),
        compiler_params=pltpu.CompilerParams(
            dimension_semantics=("parallel", "parallel"),
            vmem_limit_bytes=_vmem_budget_bytes()),
    )(q_p, k_p, v_p)
    return out if Dvp == Dv else out[..., :Dv]


def pallas_fused_proj_attention(q, k, v, wq_p, bq_p, wk_p, bk_p, wv_p, bv_p,
                                embed_dim):
    """Single fused kernel: attention over Q(q), K(k), V(v).

    q: (B, Lq, Dq), k/v: (B, Lk, Din); weights pre-transposed & pre-padded
    (in_p, E_p) with the 1/sqrt(Dq) scale folded into wq/bq; biases (1, E_p).
    """
    B, Lq, _ = q.shape
    _, Lk, _ = k.shape
    E_p = wq_p.shape[1]

    q_pad, k_pad, v_pad = _pad_last(q), _pad_last(k), _pad_last(v)
    Dq_p, Din_p = q_pad.shape[-1], k_pad.shape[-1]
    assert wq_p.shape[0] == Dq_p and wk_p.shape[0] == Din_p

    itemsize = q.dtype.itemsize
    # Per-step extras: double-buffered weights/biases + persistent K/V cache.
    extra = (2 * 4 * (Dq_p * E_p + 2 * Din_p * E_p + 3 * E_p)
             + 2 * itemsize * Lk * E_p)
    tq = _pick_tq(Lq, Lk, max(Dq_p, Din_p), E_p, itemsize, extra_bytes=extra)

    out = pl.pallas_call(
        _fused_proj_attention_kernel,
        out_shape=jax.ShapeDtypeStruct((B, Lq, E_p), q.dtype),
        grid_spec=pltpu.PrefetchScalarGridSpec(
            num_scalar_prefetch=0,
            grid=(B, Lq // tq),
            in_specs=[
                pl.BlockSpec((1, tq, Dq_p), lambda b, qi: (b, qi, 0)),
                pl.BlockSpec((1, Lk, Din_p), lambda b, qi: (b, 0, 0)),
                pl.BlockSpec((1, Lk, Din_p), lambda b, qi: (b, 0, 0)),
                # Weights/biases: grid-invariant blocks (constant index_map ->
                # fetched once, never re-DMA'd across grid steps).
                pl.BlockSpec((Dq_p, E_p), lambda b, qi: (0, 0)),
                pl.BlockSpec((1, E_p), lambda b, qi: (0, 0)),
                pl.BlockSpec((Din_p, E_p), lambda b, qi: (0, 0)),
                pl.BlockSpec((1, E_p), lambda b, qi: (0, 0)),
                pl.BlockSpec((Din_p, E_p), lambda b, qi: (0, 0)),
                pl.BlockSpec((1, E_p), lambda b, qi: (0, 0)),
            ],
            out_specs=pl.BlockSpec((1, tq, E_p), lambda b, qi: (b, qi, 0)),
            # Persistent per-batch K/V projection cache (reused by all q tiles).
            scratch_shapes=[pltpu.VMEM((Lk, E_p), q.dtype),
                            pltpu.VMEM((Lk, E_p), q.dtype)],
        ),
        compiler_params=pltpu.CompilerParams(
            # batch "parallel" (megacore shards B on v7x); the q-tile axis is
            # "arbitrary" because it carries the K/V projection cache.
            dimension_semantics=("parallel", "arbitrary"),
            vmem_limit_bytes=_vmem_budget_bytes()),
    )(q_pad, k_pad, v_pad, wq_p, bq_p, wk_p, bk_p, wv_p, bv_p)
    return out if E_p == embed_dim else out[..., :embed_dim]


# ----------------------------- module ----------------------------------------


class AFPallas:
    """JAX/Pallas port of the PyTorch AF module (forward, eval-mode)."""

    def __init__(self, input_dim, embed_dim, key):
        self.embed_dim = embed_dim
        kq, kk, kv, kbq, kbk, kbv = jax.random.split(key, 6)

        # PyTorch nn.Linear default init: U(-1/sqrt(fan_in), 1/sqrt(fan_in)).
        # Weights stored pre-transposed as (in_features, out_features).
        def init(kw, kb, in_f, out_f):
            bound = 1.0 / math.sqrt(in_f)
            w_t = jax.random.uniform(kw, (in_f, out_f), jnp.float32, -bound, bound)
            b = jax.random.uniform(kb, (out_f,), jnp.float32, -bound, bound)
            return w_t, b

        # Raw parameters (used by the plain-JAX reference).
        self.wq_t, self.bq = init(kq, kbq, embed_dim, embed_dim)
        self.wk_t, self.bk = init(kk, kbk, input_dim, embed_dim)
        self.wv_t, self.bv = init(kv, kbv, input_dim, embed_dim)

        # Kernel-side parameters: zero-padded to lane (128) multiples, with the
        # 1/sqrt(embed_dim) softmax scale folded into wq/bq (one-time cost;
        # on the proj path q.size(-1) is always embed_dim).
        scale = 1.0 / math.sqrt(embed_dim)
        e_p = _pad_dim(embed_dim)

        def pad_params(w_t, b, scl=1.0):
            in_p = _pad_dim(w_t.shape[0])
            w = (jnp.zeros((in_p, e_p), jnp.float32)
                 .at[:w_t.shape[0], :embed_dim].set(w_t * scl))
            bb = jnp.zeros((1, e_p), jnp.float32).at[0, :embed_dim].set(b * scl)
            return w, bb

        self._wq_p, self._bq_p = pad_params(self.wq_t, self.bq, scale)
        self._wk_p, self._bk_p = pad_params(self.wk_t, self.bk)
        self._wv_p, self._bv_p = pad_params(self.wv_t, self.bv)

    def __call__(self, q, k, v, proj=False):
        if proj:
            return pallas_fused_proj_attention(
                q, k, v, self._wq_p, self._bq_p, self._wk_p, self._bk_p,
                self._wv_p, self._bv_p, self.embed_dim)
        scale = 1.0 / math.sqrt(q.shape[-1])   # matches math.sqrt(q.size(-1))
        return pallas_attention(q, k, v, scale)


# ----------------------------- reference (plain JAX) --------------------------


def _ref_attention(q, k, v, scale):
    s = jnp.einsum("bqd,bkd->bqk", q, k) * scale
    p = jax.nn.softmax(s, axis=-1)
    return jnp.einsum("bqk,bkd->bqd", p, v)


def _ref_forward(mod, q, k, v, proj):
    scale = 1.0 / math.sqrt(q.shape[-1])
    if proj:
        qp = q @ mod.wq_t + mod.bq
        kp = k @ mod.wk_t + mod.bk
        vp = v @ mod.wv_t + mod.bv
        return _ref_attention(qp, kp, vp, scale)
    return _ref_attention(q, k, v, scale)


# ----------------------------- main --------------------------------------------

if __name__ == "__main__":
    key = jax.random.PRNGKey(0)
    k_params, k_q, k_k, k_v, k_q2, k_k2, k_v2 = jax.random.split(key, 7)

    input_dim, embed_dim = 16, 32
    B, Lq, Lk = 2, 8, 8

    mod = AFPallas(input_dim, embed_dim, k_params)

    # proj=True path: q has embed_dim features, k/v have input_dim features.
    q1 = jax.random.normal(k_q, (B, Lq, embed_dim), jnp.float32)
    k1 = jax.random.normal(k_k, (B, Lk, input_dim), jnp.float32)
    v1 = jax.random.normal(k_v, (B, Lk, input_dim), jnp.float32)
    out_proj = jax.block_until_ready(mod(q1, k1, v1, proj=True))
    ref_proj = _ref_forward(mod, q1, k1, v1, proj=True)
    assert out_proj.shape == (B, Lq, embed_dim)
    assert jnp.allclose(out_proj, ref_proj, atol=2e-3, rtol=2e-3)

    # proj=False path: q, k, v already share the feature dim.
    q2 = jax.random.normal(k_q2, (B, Lq, embed_dim), jnp.float32)
    k2 = jax.random.normal(k_k2, (B, Lk, embed_dim), jnp.float32)
    v2 = jax.random.normal(k_v2, (B, Lk, embed_dim), jnp.float32)
    out_noproj = jax.block_until_ready(mod(q2, k2, v2, proj=False))
    ref_noproj = _ref_forward(mod, q2, k2, v2, proj=False)
    assert out_noproj.shape == (B, Lq, embed_dim)
    assert jnp.allclose(out_noproj, ref_noproj, atol=2e-3, rtol=2e-3)

    print("KERNEL_OK")
</pallas_src>

<mosaic_0001>
module attributes {stable_mosaic.version = 11 : i64} {
  func.func @_fused_proj_attention_kernel(%arg0: i32, %arg1: i32, %arg2: memref<1x8x128xf32, #tpu.memory_space<vmem>>, %arg3: memref<1x8x128xf32, #tpu.memory_space<vmem>>, %arg4: memref<1x8x128xf32, #tpu.memory_space<vmem>>, %arg5: memref<128x128xf32, #tpu.memory_space<vmem>>, %arg6: memref<1x128xf32, #tpu.memory_space<vmem>>, %arg7: memref<128x128xf32, #tpu.memory_space<vmem>>, %arg8: memref<1x128xf32, #tpu.memory_space<vmem>>, %arg9: memref<128x128xf32, #tpu.memory_space<vmem>>, %arg10: memref<1x128xf32, #tpu.memory_space<vmem>>, %arg11: memref<1x8x128xf32, #tpu.memory_space<vmem>>, %arg12: memref<8x128xf32, #tpu.memory_space<vmem>>, %arg13: memref<8x128xf32, #tpu.memory_space<vmem>>) attributes {dimension_semantics = [#tpu.dimension_semantics<parallel>, #tpu.dimension_semantics<arbitrary>], iteration_bounds = array<i64: 2, 1>, scalar_prefetch = 0 : i64, scratch_operands = 2 : i64, tpu.core_type = #tpu.core_type<tc>, window_params = [{transform_indices = @transform_0, window_bounds = array<i64: 1, 8, 128>}, {transform_indices = @transform_1, window_bounds = array<i64: 1, 8, 128>}, {transform_indices = @transform_2, window_bounds = array<i64: 1, 8, 128>}, {pipeline_mode = #tpu.pipeline_mode<synchronous>, transform_indices = @transform_3, window_bounds = array<i64: 128, 128>}, {pipeline_mode = #tpu.pipeline_mode<synchronous>, transform_indices = @transform_4, window_bounds = array<i64: 1, 128>}, {pipeline_mode = #tpu.pipeline_mode<synchronous>, transform_indices = @transform_5, window_bounds = array<i64: 128, 128>}, {pipeline_mode = #tpu.pipeline_mode<synchronous>, transform_indices = @transform_6, window_bounds = array<i64: 1, 128>}, {pipeline_mode = #tpu.pipeline_mode<synchronous>, transform_indices = @transform_7, window_bounds = array<i64: 128, 128>}, {pipeline_mode = #tpu.pipeline_mode<synchronous>, transform_indices = @transform_8, window_bounds = array<i64: 1, 128>}, {transform_indices = @transform_9, window_bounds = array<i64: 1, 8, 128>}]} {
    %c0_i32 = arith.constant 0 : i32
    %0 = arith.cmpi eq, %arg1, %c0_i32 : i32
    %1 = arith.extui %0 : i1 to i32
    %c0_i32_0 = arith.constant 0 : i32
    %2 = arith.cmpi ne, %1, %c0_i32_0 : i32
    scf.if %2 {
      %c0_18 = arith.constant 0 : index
      %c0_19 = arith.constant 0 : index
      %c0_20 = arith.constant 0 : index
      %27 = vector.load %arg3[%c0_18, %c0_19, %c0_20] : memref<1x8x128xf32, #tpu.memory_space<vmem>>, vector<1x8x128xf32>
      %28 = vector.shape_cast %27 : vector<1x8x128xf32> to vector<8x128xf32>
      %c0_21 = arith.constant 0 : index
      %c0_22 = arith.constant 0 : index
      %29 = vector.load %arg7[%c0_21, %c0_22] : memref<128x128xf32, #tpu.memory_space<vmem>>, vector<128x128xf32>
      %cst_23 = arith.constant dense<0.000000e+00> : vector<8x128xf32>
      %30 = tpu.matmul %28, %29, %cst_23 {dimension_numbers = #tpu.dot_dimension_numbers<[1], [0], [0], [1], [0, 0, 1, 1], [], []>} : vector<8x128xf32>, vector<128x128xf32>, vector<8x128xf32> -> vector<8x128xf32>
      %c0_24 = arith.constant 0 : index
      %c0_25 = arith.constant 0 : index
      %31 = vector.load %arg8[%c0_24, %c0_25] : memref<1x128xf32, #tpu.memory_space<vmem>>, vector<1x128xf32>
      %32 = vector.broadcast %31 : vector<1x128xf32> to vector<8x128xf32>
      %33 = arith.addf %30, %32 : vector<8x128xf32>
      %c0_26 = arith.constant 0 : index
      %c0_27 = arith.constant 0 : index
      %c0_28 = arith.constant 0 : index
      %34 = vector.load %arg4[%c0_26, %c0_27, %c0_28] : memref<1x8x128xf32, #tpu.memory_space<vmem>>, vector<1x8x128xf32>
      %35 = vector.shape_cast %34 : vector<1x8x128xf32> to vector<8x128xf32>
      %c0_29 = arith.constant 0 : index
      %c0_30 = arith.constant 0 : index
      %36 = vector.load %arg9[%c0_29, %c0_30] : memref<128x128xf32, #tpu.memory_space<vmem>>, vector<128x128xf32>
      %cst_31 = arith.constant dense<0.000000e+00> : vector<8x128xf32>
      %37 = tpu.matmul %35, %36, %cst_31 {dimension_numbers = #tpu.dot_dimension_numbers<[1], [0], [0], [1], [0, 0, 1, 1], [], []>} : vector<8x128xf32>, vector<128x128xf32>, vector<8x128xf32> -> vector<8x128xf32>
      %c0_32 = arith.constant 0 : index
      %c0_33 = arith.constant 0 : index
      %38 = vector.load %arg10[%c0_32, %c0_33] : memref<1x128xf32, #tpu.memory_space<vmem>>, vector<1x128xf32>
      %39 = vector.broadcast %38 : vector<1x128xf32> to vector<8x128xf32>
      %40 = arith.addf %37, %39 : vector<8x128xf32>
      %c0_34 = arith.constant 0 : index
      %c0_35 = arith.constant 0 : index
      %41 = vector.load %arg12[%c0_34, %c0_35] : memref<8x128xf32, #tpu.memory_space<vmem>>, vector<8x128xf32>
      tpu.vector_store %arg12[%c0_34, %c0_35], %33 {strides = array<i32>} : memref<8x128xf32, #tpu.memory_space<vmem>>, vector<8x128xf32>,
      %c0_36 = arith.constant 0 : index
      %c0_37 = arith.constant 0 : index
      %42 = vector.load %arg13[%c0_36, %c0_37] : memref<8x128xf32, #tpu.memory_space<vmem>>, vector<8x128xf32>
      tpu.vector_store %arg13[%c0_36, %c0_37], %40 {strides = array<i32>} : memref<8x128xf32, #tpu.memory_space<vmem>>, vector<8x128xf32>,
    } else {
    }
    %c0 = arith.constant 0 : index
    %c0_1 = arith.constant 0 : index
    %c0_2 = arith.constant 0 : index
    %3 = vector.load %arg2[%c0, %c0_1, %c0_2] : memref<1x8x128xf32, #tpu.memory_space<vmem>>, vector<1x8x128xf32>
    %4 = vector.shape_cast %3 : vector<1x8x128xf32> to vector<8x128xf32>
    %c0_3 = arith.constant 0 : index
    %c0_4 = arith.constant 0 : index
    %5 = vector.load %arg5[%c0_3, %c0_4] : memref<128x128xf32, #tpu.memory_space<vmem>>, vector<128x128xf32>
    %cst = arith.constant dense<0.000000e+00> : vector<8x128xf32>
    %6 = tpu.matmul %4, %5, %cst {dimension_numbers = #tpu.dot_dimension_numbers<[1], [0], [0], [1], [0, 0, 1, 1], [], []>} : vector<8x128xf32>, vector<128x128xf32>, vector<8x128xf32> -> vector<8x128xf32>
    %c0_5 = arith.constant 0 : index
    %c0_6 = arith.constant 0 : index
    %7 = vector.load %arg6[%c0_5, %c0_6] : memref<1x128xf32, #tpu.memory_space<vmem>>, vector<1x128xf32>
    %8 = vector.broadcast %7 : vector<1x128xf32> to vector<8x128xf32>
    %9 = arith.addf %6, %8 : vector<8x128xf32>
    %c0_7 = arith.constant 0 : index
    %c0_8 = arith.constant 0 : index
    %10 = vector.load %arg12[%c0_7, %c0_8] : memref<8x128xf32, #tpu.memory_space<vmem>>, vector<8x128xf32>
    %c0_9 = arith.constant 0 : index
    %c0_10 = arith.constant 0 : index
    %11 = vector.load %arg13[%c0_9, %c0_10] : memref<8x128xf32, #tpu.memory_space<vmem>>, vector<8x128xf32>
    %cst_11 = arith.constant dense<0.000000e+00> : vector<8x8xf32>
    %12 = tpu.matmul %9, %10, %cst_11 {dimension_numbers = #tpu.dot_dimension_numbers<[1], [1], [0], [0], [0, 0, 1, 0], [], []>} : vector<8x128xf32>, vector<8x128xf32>, vector<8x8xf32> -> vector<8x8xf32>
    %cst_12 = arith.constant dense<0xFF800000> : vector<8xf32>
    %13 = vector.multi_reduction <maximumf>, %12, %cst_12 [1] : vector<8x8xf32> to vector<8xf32>
    %14 = vector.shape_cast %13 : vector<8xf32> to vector<8x1xf32>
    %15 = vector.broadcast %14 : vector<8x1xf32> to vector<8x8xf32>
    %16 = arith.subf %12, %15 : vector<8x8xf32>
    %17 = math.exp %16 : vector<8x8xf32>
    %cst_13 = arith.constant dense<0.000000e+00> : vector<8xf32>
    %18 = vector.multi_reduction <add>, %17, %cst_13 [1] : vector<8x8xf32> to vector<8xf32>
    %19 = vector.shape_cast %18 : vector<8xf32> to vector<8x1xf32>
    %20 = tpu.reciprocal %19 : vector<8x1xf32> -> vector<8x1xf32>
    %21 = vector.broadcast %20 : vector<8x1xf32> to vector<8x8xf32>
    %22 = arith.mulf %17, %21 : vector<8x8xf32>
    %cst_14 = arith.constant dense<0.000000e+00> : vector<8x128xf32>
    %23 = tpu.matmul %22, %11, %cst_14 {dimension_numbers = #tpu.dot_dimension_numbers<[1], [0], [0], [1], [0, 0, 1, 1], [], []>} : vector<8x8xf32>, vector<8x128xf32>, vector<8x128xf32> -> vector<8x128xf32>
    %c0_15 = arith.constant 0 : index
    %c0_16 = arith.constant 0 : index
    %c0_17 = arith.constant 0 : index
    %24 = vector.load %arg11[%c0_15, %c0_16, %c0_17] : memref<1x8x128xf32, #tpu.memory_space<vmem>>, vector<1x8x128xf32>
    %25 = vector.shape_cast %24 : vector<1x8x128xf32> to vector<8x128xf32>
    %26 = vector.shape_cast %23 : vector<8x128xf32> to vector<1x8x128xf32>
    tpu.vector_store %arg11[%c0_15, %c0_16, %c0_17], %26 {strides = array<i32>} : memref<1x8x128xf32, #tpu.memory_space<vmem>>, vector<1x8x128xf32>,
    return
  }
  func.func @transform_0(%arg0: i32, %arg1: i32) -> (i32, i32, i32) {
    %c0_i32 = arith.constant 0 : i32
    %c0_i32_0 = arith.constant 0 : i32
    return %arg0, %arg1, %c0_i32 : i32, i32, i32
  }
  func.func @transform_1(%arg0: i32, %arg1: i32) -> (i32, i32, i32) {
    %c0_i32 = arith.constant 0 : i32
    %c0_i32_0 = arith.constant 0 : i32
    %c0_i32_1 = arith.constant 0 : i32
    return %arg0, %c0_i32, %c0_i32_0 : i32, i32, i32
  }
  func.func @transform_2(%arg0: i32, %arg1: i32) -> (i32, i32, i32) {
    %c0_i32 = arith.constant 0 : i32
    %c0_i32_0 = arith.constant 0 : i32
    %c0_i32_1 = arith.constant 0 : i32
    return %arg0, %c0_i32, %c0_i32_0 : i32, i32, i32
  }
  func.func @transform_3(%arg0: i32, %arg1: i32) -> (i32, i32) {
    %c0_i32 = arith.constant 0 : i32
    %c0_i32_0 = arith.constant 0 : i32
    %c0_i32_1 = arith.constant 0 : i32
    return %c0_i32, %c0_i32_0 : i32, i32
  }
  func.func @transform_4(%arg0: i32, %arg1: i32) -> (i32, i32) {
    %c0_i32 = arith.constant 0 : i32
    %c0_i32_0 = arith.constant 0 : i32
    %c0_i32_1 = arith.constant 0 : i32
    return %c0_i32, %c0_i32_0 : i32, i32
  }
  func.func @transform_5(%arg0: i32, %arg1: i32) -> (i32, i32) {
    %c0_i32 = arith.constant 0 : i32
    %c0_i32_0 = arith.constant 0 : i32
    %c0_i32_1 = arith.constant 0 : i32
    return %c0_i32, %c0_i32_0 : i32, i32
  }
  func.func @transform_6(%arg0: i32, %arg1: i32) -> (i32, i32) {
    %c0_i32 = arith.constant 0 : i32
    %c0_i32_0 = arith.constant 0 : i32
    %c0_i32_1 = arith.constant 0 : i32
    return %c0_i32, %c0_i32_0 : i32, i32
  }
  func.func @transform_7(%arg0: i32, %arg1: i32) -> (i32, i32) {
    %c0_i32 = arith.constant 0 : i32
    %c0_i32_0 = arith.constant 0 : i32
    %c0_i32_1 = arith.constant 0 : i32
    return %c0_i32, %c0_i32_0 : i32, i32
  }
  func.func @transform_8(%arg0: i32, %arg1: i32) -> (i32, i32) {
    %c0_i32 = arith.constant 0 : i32
    %c0_i32_0 = arith.constant 0 : i32
    %c0_i32_1 = arith.constant 0 : i32
    return %c0_i32, %c0_i32_0 : i32, i32
  }
  func.func @transform_9(%arg0: i32, %arg1: i32) -> (i32, i32, i32) {
    %c0_i32 = arith.constant 0 : i32
    %c0_i32_0 = arith.constant 0 : i32
    return %arg0, %arg1, %c0_i32 : i32, i32, i32
  }
}

</mosaic_0001>

<llo_original>
// kernel: tpu_custom_call.1
$region0: #{tpu_custom_call.1}
  #allocation0 [shape = 'u32[]', space=smem, size = 0x4, offset = 0x4, fixed_abs, tag = 'smem constant byte address 0x4 - core index']
  #allocation1 [shape = 'u32[144,128]{1,0:T(1,128)}', space=vmem, size = 0x12000, scoped, tag = 'internal scratch']
  #allocation2 [shape = 'f32[8,128]{1,0:T(8,128)}', space=vmem, size = 0x1000, scoped, tag = 'scratch operand']
  #allocation3 [shape = 'f32[8,128]{1,0:T(8,128)}', space=vmem, size = 0x1000, scoped, tag = 'scratch operand']
  %s0 = inlined_call_operand.hbm [shape: f32[2,8,128], index: 0, kind: input, shape index: {}]
  %s1 = inlined_call_operand.hbm [shape: f32[2,8,128], index: 1, kind: input, shape index: {}]
  %s2 = inlined_call_operand.hbm [shape: f32[2,8,128], index: 2, kind: input, shape index: {}]
  %s3 = inlined_call_operand.hbm [shape: f32[128,128], index: 3, kind: input, shape index: {}]
  %s4 = inlined_call_operand.vmem [shape: f32[1,128], index: 4, kind: input, shape index: {}]
  %s5 = inlined_call_operand.hbm [shape: f32[128,128], index: 5, kind: input, shape index: {}]
  %s6 = inlined_call_operand.vmem [shape: f32[1,128], index: 6, kind: input, shape index: {}]
  %s7 = inlined_call_operand.hbm [shape: f32[128,128], index: 7, kind: input, shape index: {}]
  %s8 = inlined_call_operand.vmem [shape: f32[1,128], index: 8, kind: input, shape index: {}]
  %s9 = inlined_call_operand.hbm [shape: f32[2,8,128], index: 9, kind: output, shape index: {}]
  %s10 = sld [smem:[#allocation0]]
  $region97: #{tpu_custom_call.1} parent=0
    _
  %s12 = ssub.s32 1, %s10
  %s13 = scalar_select 0, %s12, %s10
  $region1: #{tpu_custom_call.1} parent=0
    #allocation4 [shape = 'u8[8192]{0}', space=vmem, size = 0x2000, scoped, tag = 'input window, operand 0']
    #allocation5 [shape = 's32[2]{0}', space=sflag, size = 0x8, scoped, tag = 'scoped memory for tpu_custom_call.1']
    #allocation6 [shape = 's32[2]{0}', space=sflag, size = 0x8, scoped, tag = 'scoped memory for tpu_custom_call.1']
    #allocation7 [shape = 'u8[8192]{0}', space=vmem, size = 0x2000, scoped, tag = 'input window, operand 1']
    #allocation8 [shape = 's32[2]{0}', space=sflag, size = 0x8, scoped, tag = 'scoped memory for tpu_custom_call.1']
    #allocation9 [shape = 'u8[8192]{0}', space=vmem, size = 0x2000, scoped, tag = 'input window, operand 2']
    #allocation10 [shape = 'u8[65536]{0}', space=vmem, size = 0x10000, scoped, tag = 'input window, operand 3, single buffered']
    #allocation11 [shape = 's32[1]{0}', space=sflag, size = 0x4, scoped, tag = 'scoped memory for tpu_custom_call.1']
    #allocation12 [shape = 'u8[65536]{0}', space=vmem, size = 0x10000, scoped, tag = 'input window, operand 5, single buffered']
    #allocation13 [shape = 'u8[65536]{0}', space=vmem, size = 0x10000, scoped, tag = 'input window, operand 7, single buffered']
    #allocation14 [shape = 's32[1]{0}', space=sflag, size = 0x4, scoped, tag = 'scoped memory for tpu_custom_call.1']
    #allocation15 [shape = 'u8[8192]{0}', space=vmem, size = 0x2000, scoped, tag = 'output window, operand 0']
    %14 = vsyncpa [#allocation5], 0
    %s15 = scalar_lea.sflag [#allocation5], 1
    %16 = vsyncpa %s15, 0
    %17 = vsyncpa [#allocation8], 0
    %s18 = scalar_lea.sflag [#allocation8], 1
    %19 = vsyncpa %s18, 0
    %20 = vsyncpa [#allocation11], 0
    %21 = vsyncpa [#allocation14], 0
    %22 = vsyncpa [#allocation6], 0
    %s23 = scalar_lea.sflag [#allocation6], 1
    %24 = vsyncpa %s23, 0
    loop: start=0, step=1, limit=4
    $region2: #{tpu_custom_call.1} parent=1 // loop_pre_header
      _
    $region3: #{tpu_custom_call.1} parent=1 // loop_header
      %s26 = sphi 0, %s30
      %p27 = scmp.ge.s32.totalorder %s26, 4
      %s33 = sphi 0, %s45
      %s34 = sphi 0, %s41
      %s35 = sphi 0, %s33
      %s36 = sphi 0, %s34
      %s37 = sphi 0, %s35
      %s38 = sphi 0, %s36
      %s50 = sphi 0, %s52
      %s53 = sphi 0, %s50
      %s54 = sphi 0, %s53
      %s70 = sphi 0, %s54
      %s76 = sphi 0, %s78
      %s79 = sphi 0, %s76
      %s80 = sphi 0, %s79
      %s96 = sphi 0, %s80
      %s102 = sphi 0, %s104
      %s105 = sphi 0, %s102
      %s106 = sphi 0, %s105
      %s122 = sphi 0, %s106
      %s126 = sphi 0, %s126
      %s128 = sphi 0, %s126
      %s129 = sphi 0, %s128
      %s143 = sphi 0, %s129
      %s147 = sphi 0, %s147
      %s149 = sphi 0, %s147
      %s150 = sphi 0, %s149
      %s164 = sphi 0, %s150
      %s168 = sphi 0, %s168
      %s170 = sphi 0, %s168
      %s171 = sphi 0, %s170
      %s185 = sphi 0, %s171
      %s189 = sphi 0, %s189
      %s191 = sphi 0, %s189
      %s192 = sphi 0, %s191
      %s206 = sphi 0, %s192
      %s210 = sphi 0, %s210
      %s212 = sphi 0, %s210
      %s213 = sphi 0, %s212
      %s227 = sphi 0, %s213
      %s231 = sphi 0, %s231
      %s233 = sphi 0, %s231
      %s234 = sphi 0, %s233
      %s248 = sphi 0, %s234
      %s256 = sphi 0, %s258
      %s259 = sphi 0, %s256
      %s260 = sphi 0, %s259
      %s276 = sphi 0, %s260
    $region4: #{tpu_custom_call.1} parent=1 // loop_header_branch
      %29 = sbr.rel (%p27) target = $region8
    $region5: #{tpu_custom_call.1} parent=1 // loop_body
      %s31 = ssub.s32 %s26, 1
      %s32 = ssub.s32 %s26, 2
      %s39 = sadd.s32 1, %s34
      %p40 = scmp.ge.s32.totalorder %s39, 1
      %s41 = scalar_select %p40, 0, %s39
      %s42 = sadd.s32 1, %s33
      %s43 = scalar_select %p40, %s42, %s33
      %p44 = scmp.ge.s32.totalorder %s43, 2
      %s45 = scalar_select %p44, 0, %s43
      %s46 = ssub.s32 %s33, %s45
      %s47 = ssub.s32 %s34, %s41
      %s48 = sor.u32 %s46, %s47
      %p49 = scmp.eq.s32.totalorder %s48, 0
      %s51 = sadd.s32 %s50, 1
      %s52 = scalar_select %p49, %s50, %s51
      %p55 = pneg %p49
      %p56 = scmp.eq.s32.totalorder %s26, 1
      %p57 = por %p55, %p56
      %p58 = scmp.ne.s32.totalorder %s50, %s53
      %p59 = scmp.eq.s32.totalorder %s26, 0
      %p60 = por %p58, %p59
      %p61 = scmp.ne.s32.totalorder %s50, %s53
      %p62 = scmp.eq.s32.totalorder %s31, 1
      %p63 = por %p61, %p62
      %p64 = scmp.ne.s32.totalorder %s53, %s54
      %p65 = scmp.eq.s32.totalorder %s31, 0
      %p66 = por %p64, %p65
      %p67 = scmp.ne.s32.totalorder %s53, %s54
      %p68 = scmp.eq.s32.totalorder %s32, 1
      %p69 = por %p67, %p68
      %p71 = scmp.ne.s32.totalorder %s54, %s70
      %p72 = scmp.eq.s32.totalorder %s32, 0
      %p73 = por %p71, %p72
      %s74 = ssub.s32 %s33, %s45
      %p75 = scmp.eq.s32.totalorder %s74, 0
      %s77 = sadd.s32 %s76, 1
      %s78 = scalar_select %p75, %s76, %s77
      %p81 = pneg %p75
      %p82 = scmp.eq.s32.totalorder %s26, 1
      %p83 = por %p81, %p82
      %p84 = scmp.ne.s32.totalorder %s76, %s79
      %p85 = scmp.eq.s32.totalorder %s26, 0
      %p86 = por %p84, %p85
      %p87 = scmp.ne.s32.totalorder %s76, %s79
      %p88 = scmp.eq.s32.totalorder %s31, 1
      %p89 = por %p87, %p88
      %p90 = scmp.ne.s32.totalorder %s79, %s80
      %p91 = scmp.eq.s32.totalorder %s31, 0
      %p92 = por %p90, %p91
      %p93 = scmp.ne.s32.totalorder %s79, %s80
      %p94 = scmp.eq.s32.totalorder %s32, 1
      %p95 = por %p93, %p94
      %p97 = scmp.ne.s32.totalorder %s80, %s96
      %p98 = scmp.eq.s32.totalorder %s32, 0
      %p99 = por %p97, %p98
      %s100 = ssub.s32 %s33, %s45
      %p101 = scmp.eq.s32.totalorder %s100, 0
      %s103 = sadd.s32 %s102, 1
      %s104 = scalar_select %p101, %s102, %s103
      %p107 = pneg %p101
      %p108 = scmp.eq.s32.totalorder %s26, 1
      %p109 = por %p107, %p108
      %p110 = scmp.ne.s32.totalorder %s102, %s105
      %p111 = scmp.eq.s32.totalorder %s26, 0
      %p112 = por %p110, %p111
      %p113 = scmp.ne.s32.totalorder %s102, %s105
      %p114 = scmp.eq.s32.totalorder %s31, 1
      %p115 = por %p113, %p114
      %p116 = scmp.ne.s32.totalorder %s105, %s106
      %p117 = scmp.eq.s32.totalorder %s31, 0
      %p118 = por %p116, %p117
      %p119 = scmp.ne.s32.totalorder %s105, %s106
      %p120 = scmp.eq.s32.totalorder %s32, 1
      %p121 = por %p119, %p120
      %p123 = scmp.ne.s32.totalorder %s106, %s122
      %p124 = scmp.eq.s32.totalorder %s32, 0
      %p125 = por %p123, %p124
      %s127 = sadd.s32 %s126, 1
      %p130 = scmp.eq.s32.totalorder %s26, 1
      %p131 = scmp.ne.s32.totalorder %s126, %s128
      %p132 = scmp.eq.s32.totalorder %s26, 0
      %p133 = por %p131, %p132
      %p134 = scmp.ne.s32.totalorder %s126, %s128
      %p135 = scmp.eq.s32.totalorder %s31, 1
      %p136 = por %p134, %p135
      %p137 = scmp.ne.s32.totalorder %s128, %s129
      %p138 = scmp.eq.s32.totalorder %s31, 0
      %p139 = por %p137, %p138
      %p140 = scmp.ne.s32.totalorder %s128, %s129
      %p141 = scmp.eq.s32.totalorder %s32, 1
      %p142 = por %p140, %p141
      %p144 = scmp.ne.s32.totalorder %s129, %s143
      %p145 = scmp.eq.s32.totalorder %s32, 0
      %p146 = por %p144, %p145
      %s148 = sadd.s32 %s147, 1
      %p151 = scmp.eq.s32.totalorder %s26, 1
      %p152 = scmp.ne.s32.totalorder %s147, %s149
      %p153 = scmp.eq.s32.totalorder %s26, 0
      %p154 = por %p152, %p153
      %p155 = scmp.ne.s32.totalorder %s147, %s149
      %p156 = scmp.eq.s32.totalorder %s31, 1
      %p157 = por %p155, %p156
      %p158 = scmp.ne.s32.totalorder %s149, %s150
      %p159 = scmp.eq.s32.totalorder %s31, 0
      %p160 = por %p158, %p159
      %p161 = scmp.ne.s32.totalorder %s149, %s150
      %p162 = scmp.eq.s32.totalorder %s32, 1
      %p163 = por %p161, %p162
      %p165 = scmp.ne.s32.totalorder %s150, %s164
      %p166 = scmp.eq.s32.totalorder %s32, 0
      %p167 = por %p165, %p166
      %s169 = sadd.s32 %s168, 1
      %p172 = scmp.eq.s32.totalorder %s26, 1
      %p173 = scmp.ne.s32.totalorder %s168, %s170
      %p174 = scmp.eq.s32.totalorder %s26, 0
      %p175 = por %p173, %p174
      %p176 = scmp.ne.s32.totalorder %s168, %s170
      %p177 = scmp.eq.s32.totalorder %s31, 1
      %p178 = por %p176, %p177
      %p179 = scmp.ne.s32.totalorder %s170, %s171
      %p180 = scmp.eq.s32.totalorder %s31, 0
      %p181 = por %p179, %p180
      %p182 = scmp.ne.s32.totalorder %s170, %s171
      %p183 = scmp.eq.s32.totalorder %s32, 1
      %p184 = por %p182, %p183
      %p186 = scmp.ne.s32.totalorder %s171, %s185
      %p187 = scmp.eq.s32.totalorder %s32, 0
      %p188 = por %p186, %p187
      %s190 = sadd.s32 %s189, 1
      %p193 = scmp.eq.s32.totalorder %s26, 1
      %p194 = scmp.ne.s32.totalorder %s189, %s191
      %p195 = scmp.eq.s32.totalorder %s26, 0
      %p196 = por %p194, %p195
      %p197 = scmp.ne.s32.totalorder %s189, %s191
      %p198 = scmp.eq.s32.totalorder %s31, 1
      %p199 = por %p197, %p198
      %p200 = scmp.ne.s32.totalorder %s191, %s192
      %p201 = scmp.eq.s32.totalorder %s31, 0
      %p202 = por %p200, %p201
      %p203 = scmp.ne.s32.totalorder %s191, %s192
      %p204 = scmp.eq.s32.totalorder %s32, 1
      %p205 = por %p203, %p204
      %p207 = scmp.ne.s32.totalorder %s192, %s206
      %p208 = scmp.eq.s32.totalorder %s32, 0
      %p209 = por %p207, %p208
      %s211 = sadd.s32 %s210, 1
      %p214 = scmp.eq.s32.totalorder %s26, 1
      %p215 = scmp.ne.s32.totalorder %s210, %s212
      %p216 = scmp.eq.s32.totalorder %s26, 0
      %p217 = por %p215, %p216
      %p218 = scmp.ne.s32.totalorder %s210, %s212
      %p219 = scmp.eq.s32.totalorder %s31, 1
      %p220 = por %p218, %p219
      %p221 = scmp.ne.s32.totalorder %s212, %s213
      %p222 = scmp.eq.s32.totalorder %s31, 0
      %p223 = por %p221, %p222
      %p224 = scmp.ne.s32.totalorder %s212, %s213
      %p225 = scmp.eq.s32.totalorder %s32, 1
      %p226 = por %p224, %p225
      %p228 = scmp.ne.s32.totalorder %s213, %s227
      %p229 = scmp.eq.s32.totalorder %s32, 0
      %p230 = por %p228, %p229
      %s232 = sadd.s32 %s231, 1
      %p235 = scmp.eq.s32.totalorder %s26, 1
      %p236 = scmp.ne.s32.totalorder %s231, %s233
      %p237 = scmp.eq.s32.totalorder %s26, 0
      %p238 = por %p236, %p237
      %p239 = scmp.ne.s32.totalorder %s231, %s233
      %p240 = scmp.eq.s32.totalorder %s31, 1
      %p241 = por %p239, %p240
      %p242 = scmp.ne.s32.totalorder %s233, %s234
      %p243 = scmp.eq.s32.totalorder %s31, 0
      %p244 = por %p242, %p243
      %p245 = scmp.ne.s32.totalorder %s233, %s234
      %p246 = scmp.eq.s32.totalorder %s32, 1
      %p247 = por %p245, %p246
      %p249 = scmp.ne.s32.totalorder %s234, %s248
      %p250 = scmp.eq.s32.totalorder %s32, 0
      %p251 = por %p249, %p250
      %s252 = ssub.s32 %s33, %s45
      %s253 = ssub.s32 %s34, %s41
      %s254 = sor.u32 %s252, %s253
      %p255 = scmp.eq.s32.totalorder %s254, 0
      %s257 = sadd.s32 %s256, 1
      %s258 = scalar_select %p255, %s256, %s257
      %p261 = pneg %p255
      %p262 = scmp.eq.s32.totalorder %s26, 1
      %p263 = por %p261, %p262
      %p264 = scmp.ne.s32.totalorder %s256, %s259
      %p265 = scmp.eq.s32.totalorder %s26, 0
      %p266 = por %p264, %p265
      %p267 = scmp.ne.s32.totalorder %s256, %s259
      %p268 = scmp.eq.s32.totalorder %s31, 1
      %p269 = por %p267, %p268
      %p270 = scmp.ne.s32.totalorder %s259, %s260
      %p271 = scmp.eq.s32.totalorder %s31, 0
      %p272 = por %p270, %p271
      %p273 = scmp.ne.s32.totalorder %s259, %s260
      %p274 = scmp.eq.s32.totalorder %s32, 1
      %p275 = por %p273, %p274
      %p277 = scmp.ne.s32.totalorder %s260, %s276
      %p278 = scmp.eq.s32.totalorder %s32, 0
      %p279 = por %p277, %p278
      %p280 = scmp.le.s32.totalorder 1, %s26
      %p281 = scmp.lt.s32.totalorder %s26, 3
      %p282 = pnand %p280, %p281
      %p283 = pneg %p282
      // Predicated region
      $region9: #{tpu_custom_call.1} parent=5 // pred_check
        _
      $region10: #{tpu_custom_call.1} parent=5 // pred_check_branch
        %285 = sbr.rel (%p282) target = $region12
      $region11: #{tpu_custom_call.1} parent=5 // pred_region
        %s286 = ssub.s32 %s26, 1
        // Predicated region
        $region13: #{tpu_custom_call.1} parent=11 // pred_check
          %p287 = pneg %p139
        $region14: #{tpu_custom_call.1} parent=11 // pred_check_branch
          %289 = sbr.rel (%p287) target = $region16
        $region15: #{tpu_custom_call.1} parent=11 // pred_region
          %s291 = ssub.s32 2048, 2048
          %292 = vsyncadd [#allocation11], %s291
          %s293 = sshll.u32 [#allocation10], 4
          %s294 = int_to_ptr.vmem [resolvable:$true] %s293
          %299 = dma.hbm_to_vmem [thread:$0]  %s3, 2048, %s294, [#allocation11], 128, 128, 8
        $region16: #{tpu_custom_call.1} parent=11 // pred_fallthru
          _
        // Predicated region
        $region17: #{tpu_custom_call.1} parent=11 // pred_check
          %p300 = pneg %p160
        $region18: #{tpu_custom_call.1} parent=11 // pred_check_branch
          %302 = sbr.rel (%p300) target = $region20
        $region19: #{tpu_custom_call.1} parent=11 // pred_region
          _
        $region20: #{tpu_custom_call.1} parent=11 // pred_fallthru
          _
        // Predicated region
        $region21: #{tpu_custom_call.1} parent=11 // pred_check
          %p303 = pneg %p181
        $region22: #{tpu_custom_call.1} parent=11 // pred_check_branch
          %305 = sbr.rel (%p303) target = $region24
        $region23: #{tpu_custom_call.1} parent=11 // pred_region
          %s307 = ssub.s32 2048, 2048
          %308 = vsyncadd [#allocation11], %s307
          %s309 = sshll.u32 [#allocation12], 4
          %s310 = int_to_ptr.vmem [resolvable:$true] %s309
          %315 = dma.hbm_to_vmem [thread:$0]  %s5, 2048, %s310, [#allocation11], 128, 128, 8
        $region24: #{tpu_custom_call.1} parent=11 // pred_fallthru
          _
        // Predicated region
        $region25: #{tpu_custom_call.1} parent=11 // pred_check
          %p316 = pneg %p202
        $region26: #{tpu_custom_call.1} parent=11 // pred_check_branch
          %318 = sbr.rel (%p316) target = $region28
        $region27: #{tpu_custom_call.1} parent=11 // pred_region
          _
        $region28: #{tpu_custom_call.1} parent=11 // pred_fallthru
          _
        // Predicated region
        $region29: #{tpu_custom_call.1} parent=11 // pred_check
          %p319 = pneg %p223
        $region30: #{tpu_custom_call.1} parent=11 // pred_check_branch
          %321 = sbr.rel (%p319) target = $region32
        $region31: #{tpu_custom_call.1} parent=11 // pred_region
          %s323 = ssub.s32 2048, 2048
          %324 = vsyncadd [#allocation14], %s323
          %s325 = sshll.u32 [#allocation13], 4
          %s326 = int_to_ptr.vmem [resolvable:$true] %s325
          %331 = dma.hbm_to_vmem [thread:$0]  %s7, 2048, %s326, [#allocation14], 128, 128, 8
        $region32: #{tpu_custom_call.1} parent=11 // pred_fallthru
          _
        // Predicated region
        $region33: #{tpu_custom_call.1} parent=11 // pred_check
          %p332 = pneg %p244
        $region34: #{tpu_custom_call.1} parent=11 // pred_check_branch
          %334 = sbr.rel (%p332) target = $region36
        $region35: #{tpu_custom_call.1} parent=11 // pred_region
          _
        $region36: #{tpu_custom_call.1} parent=11 // pred_fallthru
          _
      $region12: #{tpu_custom_call.1} parent=5 // pred_fallthru
        _
      %p335 = scmp.lt.s32.totalorder %s26, 2
      // Predicated region
      $region37: #{tpu_custom_call.1} parent=5 // pred_check
        %p336 = pneg %p335
      $region38: #{tpu_custom_call.1} parent=5 // pred_check_branch
        %338 = sbr.rel (%p336) target = $region40
      $region39: #{tpu_custom_call.1} parent=5 // pred_region
        // Predicated region
        $region41: #{tpu_custom_call.1} parent=39 // pred_check
          %p339 = pneg %p60
        $region42: #{tpu_custom_call.1} parent=39 // pred_check_branch
          %341 = sbr.rel (%p339) target = $region44
        $region43: #{tpu_custom_call.1} parent=39 // pred_region
          %s342 = sand.u32 %s50, 1
          %s343 = scalar_lea.sflag [#allocation5], %s342
          %s344 = sand.u32 %s50, 1
          %s345 = smul.addr %s344, 8
          %s346 = scalar_lea.vmem [#allocation4], %s345
          %s348 = ssub.s32 128, 128
          %349 = vsyncadd %s343, %s348
          %s350 = sadd.s32 %s34, %s33
          %s351 = smul.addr %s350, 128
          %s352 = scalar_lea.hbm %s0, %s351
          %s354 = sshll.u32 %s346, 4
          %s355 = int_to_ptr.vmem [resolvable:$true] %s354
          %357 = dma.hbm_to_vmem [thread:$0]  %s352, 128, %s355, %s343
        $region44: #{tpu_custom_call.1} parent=39 // pred_fallthru
          _
        // Predicated region
        $region45: #{tpu_custom_call.1} parent=39 // pred_check
          %p358 = pneg %p86
        $region46: #{tpu_custom_call.1} parent=39 // pred_check_branch
          %360 = sbr.rel (%p358) target = $region48
        $region47: #{tpu_custom_call.1} parent=39 // pred_region
          %s361 = sand.u32 %s26, 1
          %s362 = scalar_lea.sflag [#allocation8], %s361
          %s363 = sand.u32 %s76, 1
          %s364 = smul.addr %s363, 8
          %s365 = scalar_lea.vmem [#allocation7], %s364
          %s367 = ssub.s32 128, 128
          %368 = vsyncadd %s362, %s367
          %s369 = smul.addr %s33, 128
          %s370 = scalar_lea.hbm %s1, %s369
          %s372 = sshll.u32 %s365, 4
          %s373 = int_to_ptr.vmem [resolvable:$true] %s372
          %375 = dma.hbm_to_vmem [thread:$0]  %s370, 128, %s373, %s362
        $region48: #{tpu_custom_call.1} parent=39 // pred_fallthru
          _
        // Predicated region
        $region49: #{tpu_custom_call.1} parent=39 // pred_check
          %p376 = pneg %p112
        $region50: #{tpu_custom_call.1} parent=39 // pred_check_branch
          %378 = sbr.rel (%p376) target = $region52
        $region51: #{tpu_custom_call.1} parent=39 // pred_region
          %s379 = sand.u32 %s26, 1
          %s380 = scalar_lea.sflag [#allocation8], %s379
          %s381 = sand.u32 %s102, 1
          %s382 = smul.addr %s381, 8
          %s383 = scalar_lea.vmem [#allocation9], %s382
          %s385 = ssub.s32 128, 128
          %386 = vsyncadd %s380, %s385
          %s387 = smul.addr %s33, 128
          %s388 = scalar_lea.hbm %s2, %s387
          %s390 = sshll.u32 %s383, 4
          %s391 = int_to_ptr.vmem [resolvable:$true] %s390
          %393 = dma.hbm_to_vmem [thread:$0]  %s388, 128, %s391, %s380
        $region52: #{tpu_custom_call.1} parent=39 // pred_fallthru
          _
      $region40: #{tpu_custom_call.1} parent=5 // pred_fallthru
        _
      %p394 = scmp.le.s32.totalorder 1, %s26
      %p395 = scmp.lt.s32.totalorder %s26, 3
      %p396 = pnand %p394, %p395
      %p397 = pneg %p396
      // Predicated region
      $region53: #{tpu_custom_call.1} parent=5 // pred_check
        _
      $region54: #{tpu_custom_call.1} parent=5 // pred_check_branch
        %399 = sbr.rel (%p396) target = $region56
      $region55: #{tpu_custom_call.1} parent=5 // pred_region
        %s400 = ssub.s32 %s26, 1
        %s401 = sand.u32 %s53, 1
        %s402 = scalar_lea.sflag [#allocation5], %s401
        %s403 = sand.u32 %s53, 1
        %s404 = smul.addr %s403, 8
        %s405 = scalar_lea.vmem [#allocation4], %s404
        // Predicated region
        $region57: #{tpu_custom_call.1} parent=55 // pred_check
          %p406 = pneg %p66
        $region58: #{tpu_custom_call.1} parent=55 // pred_check_branch
          %408 = sbr.rel (%p406) target = $region60
        $region59: #{tpu_custom_call.1} parent=55 // pred_region
          %409 = dma.done %s402, 128
        $region60: #{tpu_custom_call.1} parent=55 // pred_fallthru
          _
        %s410 = sand.u32 %s31, 1
        %s411 = scalar_lea.sflag [#allocation8], %s410
        %s412 = sand.u32 %s79, 1
        %s413 = smul.addr %s412, 8
        %s414 = scalar_lea.vmem [#allocation7], %s413
        // Predicated region
        $region61: #{tpu_custom_call.1} parent=55 // pred_check
          %p415 = pneg %p92
        $region62: #{tpu_custom_call.1} parent=55 // pred_check_branch
          %417 = sbr.rel (%p415) target = $region64
        $region63: #{tpu_custom_call.1} parent=55 // pred_region
          %418 = dma.done %s411, 128
        $region64: #{tpu_custom_call.1} parent=55 // pred_fallthru
          _
        %s419 = sand.u32 %s31, 1
        %s420 = scalar_lea.sflag [#allocation8], %s419
        %s421 = sand.u32 %s105, 1
        %s422 = smul.addr %s421, 8
        %s423 = scalar_lea.vmem [#allocation9], %s422
        // Predicated region
        $region65: #{tpu_custom_call.1} parent=55 // pred_check
          %p424 = pneg %p118
        $region66: #{tpu_custom_call.1} parent=55 // pred_check_branch
          %426 = sbr.rel (%p424) target = $region68
        $region67: #{tpu_custom_call.1} parent=55 // pred_region
          %427 = dma.done %s420, 128
        $region68: #{tpu_custom_call.1} parent=55 // pred_fallthru
          _
        // Predicated region
        $region69: #{tpu_custom_call.1} parent=55 // pred_check
          %p428 = pneg %p139
        $region70: #{tpu_custom_call.1} parent=55 // pred_check_branch
          %430 = sbr.rel (%p428) target = $region72
        $region71: #{tpu_custom_call.1} parent=55 // pred_region
          %431 = dma.done [#allocation11], 2048
        $region72: #{tpu_custom_call.1} parent=55 // pred_fallthru
          _
        // Predicated region
        $region73: #{tpu_custom_call.1} parent=55 // pred_check
          %p432 = pneg %p181
        $region74: #{tpu_custom_call.1} parent=55 // pred_check_branch
          %434 = sbr.rel (%p432) target = $region76
        $region75: #{tpu_custom_call.1} parent=55 // pred_region
          %435 = dma.done [#allocation11], 2048
        $region76: #{tpu_custom_call.1} parent=55 // pred_fallthru
          _
        // Predicated region
        $region77: #{tpu_custom_call.1} parent=55 // pred_check
          %p436 = pneg %p223
        $region78: #{tpu_custom_call.1} parent=55 // pred_check_branch
          %438 = sbr.rel (%p436) target = $region80
        $region79: #{tpu_custom_call.1} parent=55 // pred_region
          %439 = dma.done [#allocation14], 2048
        $region80: #{tpu_custom_call.1} parent=55 // pred_fallthru
          _
        %s440 = sand.u32 %s53, 1
        %s441 = scalar_lea.sflag [#allocation5], %s440
        %s442 = sand.u32 %s53, 1
        %s443 = smul.addr %s442, 8
        %s444 = scalar_lea.vmem [#allocation4], %s443
        %p445 = pneg %p66
        %p446 = pneg %p63
        %s447 = sand.u32 %s31, 1
        %s448 = scalar_lea.sflag [#allocation8], %s447
        %s449 = sand.u32 %s79, 1
        %s450 = smul.addr %s449, 8
        %s451 = scalar_lea.vmem [#allocation7], %s450
        %p452 = pneg %p92
        %p453 = pneg %p89
        %s454 = sand.u32 %s31, 1
        %s455 = scalar_lea.sflag [#allocation8], %s454
        %s456 = sand.u32 %s105, 1
        %s457 = smul.addr %s456, 8
        %s458 = scalar_lea.vmem [#allocation9], %s457
        %p459 = pneg %p118
        %p460 = pneg %p115
        %p461 = pneg %p139
        %p462 = pneg %p136
        %p463 = pneg %p160
        %p464 = pneg %p157
        %p465 = pneg %p181
        %p466 = pneg %p178
        %p467 = pneg %p202
        %p468 = pneg %p199
        %p469 = pneg %p223
        %p470 = pneg %p220
        %p471 = pneg %p244
        %p472 = pneg %p241
        %p473 = pneg %p272
        %p474 = pneg %p269
        %s475 = sand.u32 %s259, 1
        %s476 = scalar_lea.sflag [#allocation6], %s475
        %s477 = sand.u32 %s259, 1
        %s478 = smul.addr %s477, 8
        %s479 = scalar_lea.vmem [#allocation15], %s478
        %p480 = scmp.eq.s32.totalorder %s36, 0
        // Predicated region
        $region81: #{tpu_custom_call.1} parent=55 // pred_check
          %p481 = pneg %p480
        $region82: #{tpu_custom_call.1} parent=55 // pred_check_branch
          %483 = sbr.rel (%p481) target = $region84
        $region83: #{tpu_custom_call.1} parent=55 // pred_region
          %v484 = vld [vmem:[%s414] sm:$0xff]
          %v485 = vld [vmem:[#allocation12] sm:$0xff]
          %v486 = vld [vmem:[#allocation12 + $0x8] sm:$0xff]
          %v487 = vld [vmem:[#allocation12 + $0x10] sm:$0xff]
          %v488 = vld [vmem:[#allocation12 + $0x18] sm:$0xff]
          %v489 = vld [vmem:[#allocation12 + $0x20] sm:$0xff]
          %v490 = vld [vmem:[#allocation12 + $0x28] sm:$0xff]
          %v491 = vld [vmem:[#allocation12 + $0x30] sm:$0xff]
          %v492 = vld [vmem:[#allocation12 + $0x38] sm:$0xff]
          %v493 = vld [vmem:[#allocation12 + $0x40] sm:$0xff]
          %v494 = vld [vmem:[#allocation12 + $0x48] sm:$0xff]
          %v495 = vld [vmem:[#allocation12 + $0x50] sm:$0xff]
          %v496 = vld [vmem:[#allocation12 + $0x58] sm:$0xff]
          %v497 = vld [vmem:[#allocation12 + $0x60] sm:$0xff]
          %v498 = vld [vmem:[#allocation12 + $0x68] sm:$0xff]
          %v499 = vld [vmem:[#allocation12 + $0x70] sm:$0xff]
          %v500 = vld [vmem:[#allocation12 + $0x78] sm:$0xff]
          %v501 = vld [vmem:[%s6] sm:$0x1]
          %v503 = vlaneseq
          %v504 = vshrl.u32 %v503, 7
          %v505 = vsub.s32 0, %v504
          %v506 = vrot.slane %v501, %v505
          %508 = vmatprep.subr.mxu0 0.0
          %509 = vmatpush1.msra.mxu0 %v485
          %510 = vmatprep.subr.mxu0 0.0
          %511 = vmatpush1.msra.mxu0 %v486
          %512 = vmatprep.subr.mxu0 0.0
          %513 = vmatpush1.msra.mxu0 %v487
          %514 = vmatprep.subr.mxu0 0.0
          %515 = vmatpush1.msra.mxu0 %v488
          %516 = vmatprep.subr.mxu0 0.0
          %517 = vmatpush1.msra.mxu0 %v489
          %518 = vmatprep.subr.mxu0 0.0
          %519 = vmatpush1.msra.mxu0 %v490
          %520 = vmatprep.subr.mxu0 0.0
          %521 = vmatpush1.msra.mxu0 %v491
          %522 = vmatprep.subr.mxu0 0.0
          %523 = vmatpush1.msra.mxu0 %v492
          %524 = vmatprep.subr.mxu0 0.0
          %525 = vmatpush1.msra.mxu0 %v493
          %526 = vmatprep.subr.mxu0 0.0
          %527 = vmatpush1.msra.mxu0 %v494
          %528 = vmatprep.subr.mxu0 0.0
          %529 = vmatpush1.msra.mxu0 %v495
          %530 = vmatprep.subr.mxu0 0.0
          %531 = vmatpush1.msra.mxu0 %v496
          %532 = vmatprep.subr.mxu0 0.0
          %533 = vmatpush1.msra.mxu0 %v497
          %534 = vmatprep.subr.mxu0 0.0
          %535 = vmatpush1.msra.mxu0 %v498
          %536 = vmatprep.subr.mxu0 0.0
          %537 = vmatpush1.msra.mxu0 %v499
          %538 = vmatprep.subr.mxu0 0.0
          %539 = vmatpush1.msra.mxu0 %v500
          %540 = vmatprep.subr.mxu0 0.0
          %541 = vmatpush1.msra.mxu0 0.0
          %542 = vmatprep.subr.mxu0 0.0
          %543 = vmatpush1.msra.mxu0 0.0
          %544 = vmatprep.subr.mxu0 0.0
          %545 = vmatpush1.msra.mxu0 0.0
          %546 = vmatprep.subr.mxu0 0.0
          %547 = vmatpush1.msra.mxu0 0.0
          %548 = vmatprep.subr.mxu0 0.0
          %549 = vmatpush1.msra.mxu0 0.0
          %550 = vmatprep.subr.mxu0 0.0
          %551 = vmatpush1.msra.mxu0 0.0
          %552 = vmatprep.subr.mxu0 0.0
          %553 = vmatpush1.msra.mxu0 0.0
          %554 = vmatprep.subr.mxu0 0.0
          %555 = vmatpush1.msra.mxu0 0.0
          %556 = vmatprep.subr.mxu0 0.0
          %557 = vmatpush1.msra.mxu0 0.0
          %558 = vmatprep.subr.mxu0 0.0
          %559 = vmatpush1.msra.mxu0 0.0
          %560 = vmatprep.subr.mxu0 0.0
          %561 = vmatpush1.msra.mxu0 0.0
          %562 = vmatprep.subr.mxu0 0.0
          %563 = vmatpush1.msra.mxu0 0.0
          %564 = vmatprep.subr.mxu0 0.0
          %565 = vmatpush1.msra.mxu0 0.0
          %566 = vmatprep.subr.mxu0 0.0
          %567 = vmatpush1.msra.mxu0 0.0
          %568 = vmatprep.subr.mxu0 0.0
          %569 = vmatpush1.msra.mxu0 0.0
          %570 = vmatprep.subr.mxu0 0.0
          %571 = vmatpush1.msra.mxu0 0.0
          %572 = vmatprep.mubr.f32.mxu0 0.0
          %573 = vmatmul.mubr.f32.gmra.mrb[0].mxu0 %v484
          %v574 = vpop.f32.mrb[0].mxu0
          %v575 = vadd.f32 %v506, %v574
          %v576 = vpop.f32.mrb[0].mxu0
          %577 = vdwg.mxu0
          %v578 = vld [vmem:[%s423] sm:$0xff]
          %v579 = vld [vmem:[#allocation13] sm:$0xff]
          %v580 = vld [vmem:[#allocation13 + $0x8] sm:$0xff]
          %v581 = vld [vmem:[#allocation13 + $0x10] sm:$0xff]
          %v582 = vld [vmem:[#allocation13 + $0x18] sm:$0xff]
          %v583 = vld [vmem:[#allocation13 + $0x20] sm:$0xff]
          %v584 = vld [vmem:[#allocation13 + $0x28] sm:$0xff]
          %v585 = vld [vmem:[#allocation13 + $0x30] sm:$0xff]
          %v586 = vld [vmem:[#allocation13 + $0x38] sm:$0xff]
          %v587 = vld [vmem:[#allocation13 + $0x40] sm:$0xff]
          %v588 = vld [vmem:[#allocation13 + $0x48] sm:$0xff]
          %v589 = vld [vmem:[#allocation13 + $0x50] sm:$0xff]
          %v590 = vld [vmem:[#allocation13 + $0x58] sm:$0xff]
          %v591 = vld [vmem:[#allocation13 + $0x60] sm:$0xff]
          %v592 = vld [vmem:[#allocation13 + $0x68] sm:$0xff]
          %v593 = vld [vmem:[#allocation13 + $0x70] sm:$0xff]
          %v594 = vld [vmem:[#allocation13 + $0x78] sm:$0xff]
          %v595 = vld [vmem:[%s8] sm:$0x1]
          %v597 = vlaneseq
          %v598 = vshrl.u32 %v597, 7
          %v599 = vsub.s32 0, %v598
          %v600 = vrot.slane %v595, %v599
          %602 = vmatprep.subr.mxu0 0.0
          %603 = vmatpush1.msra.mxu0 %v579
          %604 = vmatprep.subr.mxu0 0.0
          %605 = vmatpush1.msra.mxu0 %v580
          %606 = vmatprep.subr.mxu0 0.0
          %607 = vmatpush1.msra.mxu0 %v581
          %608 = vmatprep.subr.mxu0 0.0
          %609 = vmatpush1.msra.mxu0 %v582
          %610 = vmatprep.subr.mxu0 0.0
          %611 = vmatpush1.msra.mxu0 %v583
          %612 = vmatprep.subr.mxu0 0.0
          %613 = vmatpush1.msra.mxu0 %v584
          %614 = vmatprep.subr.mxu0 0.0
          %615 = vmatpush1.msra.mxu0 %v585
          %616 = vmatprep.subr.mxu0 0.0
          %617 = vmatpush1.msra.mxu0 %v586
          %618 = vmatprep.subr.mxu0 0.0
          %619 = vmatpush1.msra.mxu0 %v587
          %620 = vmatprep.subr.mxu0 0.0
          %621 = vmatpush1.msra.mxu0 %v588
          %622 = vmatprep.subr.mxu0 0.0
          %623 = vmatpush1.msra.mxu0 %v589
          %624 = vmatprep.subr.mxu0 0.0
          %625 = vmatpush1.msra.mxu0 %v590
          %626 = vmatprep.subr.mxu0 0.0
          %627 = vmatpush1.msra.mxu0 %v591
          %628 = vmatprep.subr.mxu0 0.0
          %629 = vmatpush1.msra.mxu0 %v592
          %630 = vmatprep.subr.mxu0 0.0
          %631 = vmatpush1.msra.mxu0 %v593
          %632 = vmatprep.subr.mxu0 0.0
          %633 = vmatpush1.msra.mxu0 %v594
          %634 = vmatprep.subr.mxu0 0.0
          %635 = vmatpush1.msra.mxu0 0.0
          %636 = vmatprep.subr.mxu0 0.0
          %637 = vmatpush1.msra.mxu0 0.0
          %638 = vmatprep.subr.mxu0 0.0
          %639 = vmatpush1.msra.mxu0 0.0
          %640 = vmatprep.subr.mxu0 0.0
          %641 = vmatpush1.msra.mxu0 0.0
          %642 = vmatprep.subr.mxu0 0.0
          %643 = vmatpush1.msra.mxu0 0.0
          %644 = vmatprep.subr.mxu0 0.0
          %645 = vmatpush1.msra.mxu0 0.0
          %646 = vmatprep.subr.mxu0 0.0
          %647 = vmatpush1.msra.mxu0 0.0
          %648 = vmatprep.subr.mxu0 0.0
          %649 = vmatpush1.msra.mxu0 0.0
          %650 = vmatprep.subr.mxu0 0.0
          %651 = vmatpush1.msra.mxu0 0.0
          %652 = vmatprep.subr.mxu0 0.0
          %653 = vmatpush1.msra.mxu0 0.0
          %654 = vmatprep.subr.mxu0 0.0
          %655 = vmatpush1.msra.mxu0 0.0
          %656 = vmatprep.subr.mxu0 0.0
          %657 = vmatpush1.msra.mxu0 0.0
          %658 = vmatprep.subr.mxu0 0.0
          %659 = vmatpush1.msra.mxu0 0.0
          %660 = vmatprep.subr.mxu0 0.0
          %661 = vmatpush1.msra.mxu0 0.0
          %662 = vmatprep.subr.mxu0 0.0
          %663 = vmatpush1.msra.mxu0 0.0
          %664 = vmatprep.subr.mxu0 0.0
          %665 = vmatpush1.msra.mxu0 0.0
          %666 = vmatprep.mubr.f32.mxu0 0.0
          %667 = vmatmul.mubr.f32.gmra.mrb[0].mxu0 %v578
          %v668 = vpop.f32.mrb[0].mxu0
          %v669 = vadd.f32 %v600, %v668
          %v670 = vpop.f32.mrb[0].mxu0
          %671 = vdwg.mxu0
          %672 = vst [vmem:[#allocation2] sm:$0xff] %v575
          %673 = vst [vmem:[#allocation3] sm:$0xff] %v669
        $region84: #{tpu_custom_call.1} parent=55 // pred_fallthru
          _
        %v674 = vld [vmem:[%s405] sm:$0xff]
        %v675 = vld [vmem:[#allocation10] sm:$0xff]
        %v676 = vld [vmem:[#allocation10 + $0x8] sm:$0xff]
        %v677 = vld [vmem:[#allocation10 + $0x10] sm:$0xff]
        %v678 = vld [vmem:[#allocation10 + $0x18] sm:$0xff]
        %v679 = vld [vmem:[#allocation10 + $0x20] sm:$0xff]
        %v680 = vld [vmem:[#allocation10 + $0x28] sm:$0xff]
        %v681 = vld [vmem:[#allocation10 + $0x30] sm:$0xff]
        %v682 = vld [vmem:[#allocation10 + $0x38] sm:$0xff]
        %v683 = vld [vmem:[#allocation10 + $0x40] sm:$0xff]
        %v684 = vld [vmem:[#allocation10 + $0x48] sm:$0xff]
        %v685 = vld [vmem:[#allocation10 + $0x50] sm:$0xff]
        %v686 = vld [vmem:[#allocation10 + $0x58] sm:$0xff]
        %v687 = vld [vmem:[#allocation10 + $0x60] sm:$0xff]
        %v688 = vld [vmem:[#allocation10 + $0x68] sm:$0xff]
        %v689 = vld [vmem:[#allocation10 + $0x70] sm:$0xff]
        %v690 = vld [vmem:[#allocation10 + $0x78] sm:$0xff]
        %v691 = vld [vmem:[%s4] sm:$0x1]
        %v693 = vlaneseq
        %v694 = vshrl.u32 %v693, 7
        %v695 = vsub.s32 0, %v694
        %v696 = vrot.slane %v691, %v695
        %698 = vmatprep.subr.mxu0 0.0
        %699 = vmatpush1.msra.mxu0 %v675
        %700 = vmatprep.subr.mxu0 0.0
        %701 = vmatpush1.msra.mxu0 %v676
        %702 = vmatprep.subr.mxu0 0.0
        %703 = vmatpush1.msra.mxu0 %v677
        %704 = vmatprep.subr.mxu0 0.0
        %705 = vmatpush1.msra.mxu0 %v678
        %706 = vmatprep.subr.mxu0 0.0
        %707 = vmatpush1.msra.mxu0 %v679
        %708 = vmatprep.subr.mxu0 0.0
        %709 = vmatpush1.msra.mxu0 %v680
        %710 = vmatprep.subr.mxu0 0.0
        %711 = vmatpush1.msra.mxu0 %v681
        %712 = vmatprep.subr.mxu0 0.0
        %713 = vmatpush1.msra.mxu0 %v682
        %714 = vmatprep.subr.mxu0 0.0
        %715 = vmatpush1.msra.mxu0 %v683
        %716 = vmatprep.subr.mxu0 0.0
        %717 = vmatpush1.msra.mxu0 %v684
        %718 = vmatprep.subr.mxu0 0.0
        %719 = vmatpush1.msra.mxu0 %v685
        %720 = vmatprep.subr.mxu0 0.0
        %721 = vmatpush1.msra.mxu0 %v686
        %722 = vmatprep.subr.mxu0 0.0
        %723 = vmatpush1.msra.mxu0 %v687
        %724 = vmatprep.subr.mxu0 0.0
        %725 = vmatpush1.msra.mxu0 %v688
        %726 = vmatprep.subr.mxu0 0.0
        %727 = vmatpush1.msra.mxu0 %v689
        %728 = vmatprep.subr.mxu0 0.0
        %729 = vmatpush1.msra.mxu0 %v690
        %730 = vmatprep.subr.mxu0 0.0
        %731 = vmatpush1.msra.mxu0 0.0
        %732 = vmatprep.subr.mxu0 0.0
        %733 = vmatpush1.msra.mxu0 0.0
        %734 = vmatprep.subr.mxu0 0.0
        %735 = vmatpush1.msra.mxu0 0.0
        %736 = vmatprep.subr.mxu0 0.0
        %737 = vmatpush1.msra.mxu0 0.0
        %738 = vmatprep.subr.mxu0 0.0
        %739 = vmatpush1.msra.mxu0 0.0
        %740 = vmatprep.subr.mxu0 0.0
        %741 = vmatpush1.msra.mxu0 0.0
        %742 = vmatprep.subr.mxu0 0.0
        %743 = vmatpush1.msra.mxu0 0.0
        %744 = vmatprep.subr.mxu0 0.0
        %745 = vmatpush1.msra.mxu0 0.0
        %746 = vmatprep.subr.mxu0 0.0
        %747 = vmatpush1.msra.mxu0 0.0
        %748 = vmatprep.subr.mxu0 0.0
        %749 = vmatpush1.msra.mxu0 0.0
        %750 = vmatprep.subr.mxu0 0.0
        %751 = vmatpush1.msra.mxu0 0.0
        %752 = vmatprep.subr.mxu0 0.0
        %753 = vmatpush1.msra.mxu0 0.0
        %754 = vmatprep.subr.mxu0 0.0
        %755 = vmatpush1.msra.mxu0 0.0
        %756 = vmatprep.subr.mxu0 0.0
        %757 = vmatpush1.msra.mxu0 0.0
        %758 = vmatprep.subr.mxu0 0.0
        %759 = vmatpush1.msra.mxu0 0.0
        %760 = vmatprep.subr.mxu0 0.0
        %761 = vmatpush1.msra.mxu0 0.0
        %762 = vmatprep.mubr.f32.mxu0 0.0
        %763 = vmatmul.mubr.f32.gmra.mrb[0].mxu0 %v674
        %v764 = vpop.f32.mrb[0].mxu0
        %v765 = vadd.f32 %v696, %v764
        %v766 = vpop.f32.mrb[0].mxu0
        %767 = vdwg.mxu0
        %v768 = vld [vmem:[#allocation2] sm:$0xff]
        %v769 = vld [vmem:[#allocation3] sm:$0xff]
        %770 = vmatprep.subr.mxu0 0.0
        %771 = vmatpush1.xpose.msra.mxu0 %v768
        %772 = vmatprep.subr.mxu0 0.0
        %773 = vmatpush1.xpose.msra.mxu0 0.0
        %774 = vmatprep.subr.mxu0 0.0
        %775 = vmatpush1.xpose.msra.mxu0 0.0
        %776 = vmatprep.subr.mxu0 0.0
        %777 = vmatpush1.xpose.msra.mxu0 0.0
        %778 = vmatprep.subr.mxu0 0.0
        %779 = vmatpush1.xpose.msra.mxu0 0.0
        %780 = vmatprep.subr.mxu0 0.0
        %781 = vmatpush1.xpose.msra.mxu0 0.0
        %782 = vmatprep.subr.mxu0 0.0
        %783 = vmatpush1.xpose.msra.mxu0 0.0
        %784 = vmatprep.subr.mxu0 0.0
        %785 = vmatpush1.xpose.msra.mxu0 0.0
        %786 = vmatprep.subr.mxu0 0.0
        %787 = vmatpush1.xpose.msra.mxu0 0.0
        %788 = vmatprep.subr.mxu0 0.0
        %789 = vmatpush1.xpose.msra.mxu0 0.0
        %790 = vmatprep.subr.mxu0 0.0
        %791 = vmatpush1.xpose.msra.mxu0 0.0
        %792 = vmatprep.subr.mxu0 0.0
        %793 = vmatpush1.xpose.msra.mxu0 0.0
        %794 = vmatprep.subr.mxu0 0.0
        %795 = vmatpush1.xpose.msra.mxu0 0.0
        %796 = vmatprep.subr.mxu0 0.0
        %797 = vmatpush1.xpose.msra.mxu0 0.0
        %798 = vmatprep.subr.mxu0 0.0
        %799 = vmatpush1.xpose.msra.mxu0 0.0
        %800 = vmatprep.subr.mxu0 0.0
        %801 = vmatpush1.xpose.msra.mxu0 0.0
        %802 = vmatprep.subr.mxu0 0.0
        %803 = vmatpush1.xpose.msra.mxu0 0.0
        %804 = vmatprep.subr.mxu0 0.0
        %805 = vmatpush1.xpose.msra.mxu0 0.0
        %806 = vmatprep.subr.mxu0 0.0
        %807 = vmatpush1.xpose.msra.mxu0 0.0
        %808 = vmatprep.subr.mxu0 0.0
        %809 = vmatpush1.xpose.msra.mxu0 0.0
        %810 = vmatprep.subr.mxu0 0.0
        %811 = vmatpush1.xpose.msra.mxu0 0.0
        %812 = vmatprep.subr.mxu0 0.0
        %813 = vmatpush1.xpose.msra.mxu0 0.0
        %814 = vmatprep.subr.mxu0 0.0
        %815 = vmatpush1.xpose.msra.mxu0 0.0
        %816 = vmatprep.subr.mxu0 0.0
        %817 = vmatpush1.xpose.msra.mxu0 0.0
        %818 = vmatprep.subr.mxu0 0.0
        %819 = vmatpush1.xpose.msra.mxu0 0.0
        %820 = vmatprep.subr.mxu0 0.0
        %821 = vmatpush1.xpose.msra.mxu0 0.0
        %822 = vmatprep.subr.mxu0 0.0
        %823 = vmatpush1.xpose.msra.mxu0 0.0
        %824 = vmatprep.subr.mxu0 0.0
        %825 = vmatpush1.xpose.msra.mxu0 0.0
        %826 = vmatprep.subr.mxu0 0.0
        %827 = vmatpush1.xpose.msra.mxu0 0.0
        %828 = vmatprep.subr.mxu0 0.0
        %829 = vmatpush1.xpose.msra.mxu0 0.0
        %830 = vmatprep.subr.mxu0 0.0
        %831 = vmatpush1.xpose.msra.mxu0 0.0
        %832 = vmatprep.subr.mxu0 0.0
        %833 = vmatpush1.xpose.msra.mxu0 0.0
        %834 = vmatprep.mubr.f32.mxu0 0.0
        %835 = vmatmul.mubr.f32.gmra.mrb[0].mxu0 %v765
        %v836 = vpop.f32.mrb[0].mxu0
        %v837 = vadd.f32 0.0, %v836
        %v838 = vpop.f32.mrb[0].mxu0
        %839 = vdwg.mxu0
        %vm840 = vcmask 64512
        %v841 = vsel %vm840, %v837, -inf
        %842 = vmax.xlane.f32.xlu0 %v841
        %v843 = vpop.xlane.xlu0 %842
        %v844 = vsub.f32 %v837, %v843
        %v845 = vmul.f32 %v844, 1.442695
        %v846 = vpow.pop %v845
        %v847 = vsel %vm840, %v846, 0.0
        %848 = vadd.xlane.f32.xlu0 %v847
        %v849 = vpop.xlane.xlu0 %848
        %v850 = vrcp.pop %v849
        %v851 = vmul.f32 %v846, %v850
        %v853 = vsel %vm840, %v851, 0
        %855 = vmatprep.subr.mxu0 0.0
        %856 = vmatpush1.msra.mxu0 %v769
        %857 = vmatprep.subr.mxu0 0.0
        %858 = vmatpush1.msra.mxu0 0.0
        %859 = vmatprep.subr.mxu0 0.0
        %860 = vmatpush1.msra.mxu0 0.0
        %861 = vmatprep.subr.mxu0 0.0
        %862 = vmatpush1.msra.mxu0 0.0
        %863 = vmatprep.subr.mxu0 0.0
        %864 = vmatpush1.msra.mxu0 0.0
        %865 = vmatprep.subr.mxu0 0.0
        %866 = vmatpush1.msra.mxu0 0.0
        %867 = vmatprep.subr.mxu0 0.0
        %868 = vmatpush1.msra.mxu0 0.0
        %869 = vmatprep.subr.mxu0 0.0
        %870 = vmatpush1.msra.mxu0 0.0
        %871 = vmatprep.subr.mxu0 0.0
        %872 = vmatpush1.msra.mxu0 0.0
        %873 = vmatprep.subr.mxu0 0.0
        %874 = vmatpush1.msra.mxu0 0.0
        %875 = vmatprep.subr.mxu0 0.0
        %876 = vmatpush1.msra.mxu0 0.0
        %877 = vmatprep.subr.mxu0 0.0
        %878 = vmatpush1.msra.mxu0 0.0
        %879 = vmatprep.subr.mxu0 0.0
        %880 = vmatpush1.msra.mxu0 0.0
        %881 = vmatprep.subr.mxu0 0.0
        %882 = vmatpush1.msra.mxu0 0.0
        %883 = vmatprep.subr.mxu0 0.0
        %884 = vmatpush1.msra.mxu0 0.0
        %885 = vmatprep.subr.mxu0 0.0
        %886 = vmatpush1.msra.mxu0 0.0
        %887 = vmatprep.subr.mxu0 0.0
        %888 = vmatpush1.msra.mxu0 0.0
        %889 = vmatprep.subr.mxu0 0.0
        %890 = vmatpush1.msra.mxu0 0.0
        %891 = vmatprep.subr.mxu0 0.0
        %892 = vmatpush1.msra.mxu0 0.0
        %893 = vmatprep.subr.mxu0 0.0
        %894 = vmatpush1.msra.mxu0 0.0
        %895 = vmatprep.subr.mxu0 0.0
        %896 = vmatpush1.msra.mxu0 0.0
        %897 = vmatprep.subr.mxu0 0.0
        %898 = vmatpush1.msra.mxu0 0.0
        %899 = vmatprep.subr.mxu0 0.0
        %900 = vmatpush1.msra.mxu0 0.0
        %901 = vmatprep.subr.mxu0 0.0
        %902 = vmatpush1.msra.mxu0 0.0
        %903 = vmatprep.subr.mxu0 0.0
        %904 = vmatpush1.msra.mxu0 0.0
        %905 = vmatprep.subr.mxu0 0.0
        %906 = vmatpush1.msra.mxu0 0.0
        %907 = vmatprep.subr.mxu0 0.0
        %908 = vmatpush1.msra.mxu0 0.0
        %909 = vmatprep.subr.mxu0 0.0
        %910 = vmatpush1.msra.mxu0 0.0
        %911 = vmatprep.subr.mxu0 0.0
        %912 = vmatpush1.msra.mxu0 0.0
        %913 = vmatprep.subr.mxu0 0.0
        %914 = vmatpush1.msra.mxu0 0.0
        %915 = vmatprep.subr.mxu0 0.0
        %916 = vmatpush1.msra.mxu0 0.0
        %917 = vmatprep.subr.mxu0 0.0
        %918 = vmatpush1.msra.mxu0 0.0
        %919 = vmatprep.mubr.f32.mxu0 0.0
        %920 = vmatmul.mubr.f32.gmra.mrb[0].mxu0 %v853
        %v921 = vpop.f32.mrb[0].mxu0
        %v922 = vadd.f32 0.0, %v921
        %v923 = vpop.f32.mrb[0].mxu0
        %924 = vdwg.mxu0
        %925 = vst [vmem:[%s479] sm:$0xff] %v922
        %s926 = sand.u32 %s259, 1
        %s927 = scalar_lea.sflag [#allocation6], %s926
        %s928 = sand.u32 %s259, 1
        %s929 = smul.addr %s928, 8
        %s930 = scalar_lea.vmem [#allocation15], %s929
        // Predicated region
        $region85: #{tpu_custom_call.1} parent=55 // pred_check
          %p931 = pneg %p269
        $region86: #{tpu_custom_call.1} parent=55 // pred_check_branch
          %933 = sbr.rel (%p931) target = $region88
        $region87: #{tpu_custom_call.1} parent=55 // pred_region
          %s935 = ssub.s32 128, 128
          %936 = vsyncadd %s927, %s935
          %s937 = sadd.s32 %s36, %s35
          %s938 = smul.addr %s937, 128
          %s939 = scalar_lea.hbm %s9, %s938
          %s941 = sshll.u32 %s930, 4
          %s942 = int_to_ptr.vmem [resolvable:$true] %s941
          %944 = dma.vmem_to_hbm [thread:$0]  %s942, 128, %s939, %s927
        $region88: #{tpu_custom_call.1} parent=55 // pred_fallthru
          _
      $region56: #{tpu_custom_call.1} parent=5 // pred_fallthru
        _
      %p945 = scmp.le.s32.totalorder 2, %s26
      // Predicated region
      $region89: #{tpu_custom_call.1} parent=5 // pred_check
        %p946 = pneg %p945
      $region90: #{tpu_custom_call.1} parent=5 // pred_check_branch
        %948 = sbr.rel (%p946) target = $region92
      $region91: #{tpu_custom_call.1} parent=5 // pred_region
        %s949 = ssub.s32 %s26, 2
        // Predicated region
        $region93: #{tpu_custom_call.1} parent=91 // pred_check
          %p950 = pneg %p275
        $region94: #{tpu_custom_call.1} parent=91 // pred_check_branch
          %952 = sbr.rel (%p950) target = $region96
        $region95: #{tpu_custom_call.1} parent=91 // pred_region
          %s953 = sand.u32 %s260, 1
          %s954 = scalar_lea.sflag [#allocation6], %s953
          %s955 = sand.u32 %s260, 1
          %s956 = smul.addr %s955, 8
          %s957 = scalar_lea.vmem [#allocation15], %s956
          %958 = dma.done %s954, 128
        $region96: #{tpu_custom_call.1} parent=91 // pred_fallthru
          _
      $region92: #{tpu_custom_call.1} parent=5 // pred_fallthru
        _
    $region6: #{tpu_custom_call.1} parent=1 // loop_footer
      %s30 = sadd.s32 1, %s26
    $region7: #{tpu_custom_call.1} parent=1 // loop_footer_branch
      %25 = sbr.rel target = $region3
    $region8: #{tpu_custom_call.1} parent=1 // loop_exit
      _
    %959 = vsyncpa [#allocation5], 1
    %s960 = scalar_lea.sflag [#allocation5], 1
    %961 = vsyncpa %s960, 1
    %962 = vsyncpa [#allocation8], 1
    %s963 = scalar_lea.sflag [#allocation8], 1
    %964 = vsyncpa %s963, 1
    %965 = vsyncpa [#allocation11], 1
    %966 = vsyncpa [#allocation14], 1
    %967 = vsyncpa [#allocation6], 1
    %s968 = scalar_lea.sflag [#allocation6], 1
    %969 = vsyncpa %s968, 1

</llo_original>
